<compile_context>
chip_gen: v7x
topology: tpu7x:2x2x1
jax: 0.10.0
libtpu: 0.0.40
codegen_flags: <defaults>
</compile_context>

<pallas_src>
import functools

import jax
import jax.numpy as jnp
import numpy as np
from jax.experimental import pallas as pl
from jax.experimental.pallas import tpu as pltpu


def _round_up(x, m):
    return ((x + m - 1) // m) * m


def _pick_vmem_limit_bytes():
    # Derive the scoped-VMEM limit from the chip instead of hardcoding.
    try:
        cap = int(pltpu.get_tpu_info().vmem_capacity_bytes)
    except Exception:
        cap = 64 * 1024 * 1024
    return max(32 * 1024 * 1024, (cap * 3) // 4)


# ----------------------- grouped expert-FFN Pallas kernel --------------------

def moe_gmm_kernel(eid_ref,      # [G_tiles] int32 SMEM: expert id of each row tile
                   nvalid_ref,   # [1]       int32 SMEM: number of valid row tiles
                   x_ref,        # [tm, H]   gathered activations (bf16)
                   wg_ref,       # [1, H, ti] gate weights of expert eid[g]
                   wu_ref,       # [1, H, ti] up   weights
                   wd_ref,       # [1, ti, H] down weights
                   rw_ref,       # [tm, 1]   f32 per-row routing weight (0 for pad rows)
                   o_ref,        # [tm, H]   output (f32)
                   acc_ref):     # [tm, H]   f32 VMEM accumulator (over I chunks)
    g = pl.program_id(0)
    c = pl.program_id(1)
    nc = pl.num_programs(1)

    @pl.when(c == 0)
    def _():
        acc_ref[...] = jnp.zeros_like(acc_ref)

    # Skip compute for trailing padding tiles (their output is never read back).
    @pl.when(g < nvalid_ref[0])
    def _():
        x = x_ref[...]                                            # [tm, H] bf16
        gate = jnp.dot(x, wg_ref[0], preferred_element_type=jnp.float32)
        up = jnp.dot(x, wu_ref[0], preferred_element_type=jnp.float32)
        h = (gate * jax.nn.sigmoid(gate)) * up                    # SwiGLU, f32
        h = h * rw_ref[...]                                       # routing weight
        acc_ref[...] += jnp.dot(h.astype(wd_ref.dtype), wd_ref[0],
                                preferred_element_type=jnp.float32)

    @pl.when(c == nc - 1)
    def _():
        o_ref[...] = acc_ref[...].astype(o_ref.dtype)             # single lane-dense store


# ------------------------------ host wrapper ---------------------------------

def deepseek_moe_forward(hidden_states, params, *, top_k, norm_topk_prob=True,
                         token_block=256, intermediate_block=None):
    """Inference forward of DeepseekMoE.  hidden_states: [B, S, H]."""
    B, S, H = hidden_states.shape
    x = hidden_states.reshape(-1, H)                              # [T, H]
    T = x.shape[0]
    E, _, I = params["wg"].shape
    out_dtype = hidden_states.dtype
    compute_dtype = params["wg"].dtype

    has_shared = "sh_wg" in params
    n_sh = (params["sh_wd"].shape[0] // I) if has_shared else 0
    if has_shared:
        assert n_sh * I == params["sh_wd"].shape[0], "Ish must be a multiple of I"

    # -------------------- MoEGate (tiny; stays in XLA glue) ------------------
    xf = x.astype(jnp.float32)
    logits = jnp.dot(xf, params["gate_w"].T.astype(jnp.float32))  # [T, E]
    scores = jax.nn.softmax(logits, axis=-1)
    topk_w, topk_i = jax.lax.top_k(scores, top_k)                 # [T, K]
    if top_k > 1 and norm_topk_prob:
        topk_w = topk_w / (jnp.sum(topk_w, axis=-1, keepdims=True) + 1e-20)

    # ------- fold shared experts in as always-routed pseudo-experts ----------
    E_tot = E + n_sh
    S_tot = top_k + n_sh
    if n_sh > 0:
        sh_ids = jnp.broadcast_to(
            jnp.arange(E, E_tot, dtype=topk_i.dtype)[None, :], (T, n_sh))
        slot_e = jnp.concatenate([topk_i, sh_ids], axis=1).reshape(-1)      # [T*S_tot]
        slot_w = jnp.concatenate(
            [topk_w.astype(jnp.float32), jnp.ones((T, n_sh), jnp.float32)],
            axis=1).reshape(-1)
        sh_wg = params["sh_wg"].reshape(H, n_sh, I).transpose(1, 0, 2)      # [n_sh,H,I]
        sh_wu = params["sh_wu"].reshape(H, n_sh, I).transpose(1, 0, 2)
        sh_wd = params["sh_wd"].reshape(n_sh, I, H)                         # [n_sh,I,H]
        wg = jnp.concatenate([params["wg"], sh_wg], axis=0)                 # [E_tot,H,I]
        wu = jnp.concatenate([params["wu"], sh_wu], axis=0)
        wd = jnp.concatenate([params["wd"], sh_wd], axis=0)                 # [E_tot,I,H]
    else:
        slot_e = topk_i.reshape(-1)
        slot_w = topk_w.astype(jnp.float32).reshape(-1)
        wg, wu, wd = params["wg"], params["wu"], params["wd"]
    slot_t = jnp.repeat(jnp.arange(T, dtype=jnp.int32), S_tot)              # [T*S_tot]
    TS = T * S_tot

    # Row tile (sublane multiple of 8; clamp for tiny inputs).
    tm = int(min(token_block, max(8, _round_up(TS, 8))))
    tm = _round_up(tm, 8)

    # ------------------- grouped (sorted) token dispatch ---------------------
    sort_idx = jnp.argsort(slot_e)
    sorted_e = slot_e[sort_idx]
    sorted_w = slot_w[sort_idx]
    sorted_t = slot_t[sort_idx]

    counts = jnp.bincount(slot_e, length=E_tot)                   # [E_tot]
    tiles_per_e = (counts + tm - 1) // tm
    padded_counts = tiles_per_e * tm
    pad_start = jnp.concatenate(
        [jnp.zeros((1,), padded_counts.dtype), jnp.cumsum(padded_counts)[:-1]])
    grp_start = jnp.concatenate(
        [jnp.zeros((1,), counts.dtype), jnp.cumsum(counts)[:-1]])

    rank_in_group = (jnp.arange(TS, dtype=jnp.int32)
                     - grp_start[sorted_e].astype(jnp.int32))
    dest_row = pad_start[sorted_e].astype(jnp.int32) + rank_in_group        # [TS]

    # Static bound on number of padded row tiles: sum(ceil(c_e/tm)) <= TS//tm + E_tot.
    G_tiles = TS // tm + E_tot
    G_rows = G_tiles * tm

    n_valid_tiles = jnp.sum(tiles_per_e).astype(jnp.int32).reshape((1,))
    tile_cum = jnp.cumsum(tiles_per_e)
    tile_eid = jnp.searchsorted(tile_cum, jnp.arange(G_tiles), side="right")
    # Trailing unused tiles keep the last expert id -> same weight block, no extra DMA.
    tile_eid = jnp.minimum(tile_eid, E_tot - 1).astype(jnp.int32)

    # Gather activations / routing weights into the padded, expert-sorted buffer.
    x_c = x.astype(compute_dtype)
    xg = jnp.zeros((G_rows, H), compute_dtype).at[dest_row].set(x_c[sorted_t])
    rwg = jnp.zeros((G_rows, 1), jnp.float32).at[dest_row, 0].set(sorted_w)

    # Optional intermediate-dim chunking (set ~512-1024 on v7x at production I).
    if intermediate_block is None:
        ti = I
    else:
        ti = int(min(intermediate_block, I))
        if I % ti != 0:
            ti = I
    nc = I // ti

    grid = (G_tiles, nc)
    o_g = pl.pallas_call(
        moe_gmm_kernel,
        out_shape=jax.ShapeDtypeStruct((G_rows, H), jnp.float32),
        grid_spec=pltpu.PrefetchScalarGridSpec(
            num_scalar_prefetch=2,
            grid=grid,
            in_specs=[
                pl.BlockSpec((tm, H), lambda g, c, eid, nv: (g, 0)),          # xg
                pl.BlockSpec((1, H, ti), lambda g, c, eid, nv: (eid[g], 0, c)),  # wg
                pl.BlockSpec((1, H, ti), lambda g, c, eid, nv: (eid[g], 0, c)),  # wu
                pl.BlockSpec((1, ti, H), lambda g, c, eid, nv: (eid[g], c, 0)),  # wd
                pl.BlockSpec((tm, 1), lambda g, c, eid, nv: (g, 0)),          # rw
            ],
            out_specs=pl.BlockSpec((tm, H), lambda g, c, eid, nv: (g, 0)),
            scratch_shapes=[pltpu.VMEM((tm, H), jnp.float32)],
        ),
        compiler_params=pltpu.CompilerParams(
            # Row-tile axis is parallel (disjoint output tiles; on v7x megacore the
            # expert-contiguous tile order also splits weight streaming across cores);
            # the I-chunk axis is the resident-accumulator reduction axis.
            dimension_semantics=("parallel", "arbitrary"),
            vmem_limit_bytes=_pick_vmem_limit_bytes(),
        ),
    )(tile_eid, n_valid_tiles, xg, wg, wu, wd, rwg)

    # ------------- un-sort: combine per-slot expert outputs per token --------
    y = jnp.zeros((T, H), jnp.float32).at[sorted_t].add(o_g[dest_row])
    return y.astype(out_dtype).reshape(B, S, H)


# --------------------------- pure-JAX reference ------------------------------

def reference_forward(hidden_states, params, *, top_k, norm_topk_prob=True):
    B, S, H = hidden_states.shape
    xf = hidden_states.reshape(-1, H).astype(jnp.float32)
    T = xf.shape[0]
    E = params["gate_w"].shape[0]

    logits = jnp.dot(xf, params["gate_w"].T.astype(jnp.float32))
    scores = jax.nn.softmax(logits, axis=-1)
    topk_w, topk_i = jax.lax.top_k(scores, top_k)
    if top_k > 1 and norm_topk_prob:
        topk_w = topk_w / (jnp.sum(topk_w, axis=-1, keepdims=True) + 1e-20)
    dense_rw = jnp.zeros((T, E), jnp.float32).at[
        jnp.arange(T)[:, None], topk_i].add(topk_w.astype(jnp.float32))

    cdt = params["wg"].dtype
    x = hidden_states.reshape(-1, H).astype(cdt)

    def ffn(wg, wu, wd, scale=None):
        g = jnp.dot(x, wg, preferred_element_type=jnp.float32)
        u = jnp.dot(x, wu, preferred_element_type=jnp.float32)
        h = (g * jax.nn.sigmoid(g)) * u
        if scale is not None:
            h = h * scale
        return jnp.dot(h.astype(wd.dtype), wd, preferred_element_type=jnp.float32)

    y = ffn(params["sh_wg"], params["sh_wu"], params["sh_wd"])
    for e in range(E):
        y = y + ffn(params["wg"][e], params["wu"][e], params["wd"][e],
                    scale=dense_rw[:, e:e + 1])
    return y.astype(hidden_states.dtype).reshape(B, S, H)


# ---------------------------------- main -------------------------------------

if __name__ == "__main__":
    # Small config consistent with the module
    B, S, H = 2, 8, 32
    n_routed_experts = 4
    moe_intermediate_size = 16
    num_experts_per_tok = 2
    n_shared_experts = 2
    I = moe_intermediate_size
    Ish = moe_intermediate_size * n_shared_experts

    key = jax.random.PRNGKey(0)
    ks = jax.random.split(key, 8)

    def init(k, shape, fan_in, dtype=jnp.bfloat16):
        bound = 1.0 / np.sqrt(fan_in)
        return jax.random.uniform(k, shape, jnp.float32, -bound, bound).astype(dtype)

    params = {
        # gate weight kept in f32 (tiny, stays in XLA glue), torch layout [E, H]
        "gate_w": init(ks[0], (n_routed_experts, H), H, jnp.float32),
        # routed experts, pre-transposed for x @ W, streamed in bf16
        "wg": init(ks[1], (n_routed_experts, H, I), H),
        "wu": init(ks[2], (n_routed_experts, H, I), H),
        "wd": init(ks[3], (n_routed_experts, I, H), I),
        # shared experts (bf16)
        "sh_wg": init(ks[4], (H, Ish), H),
        "sh_wu": init(ks[5], (H, Ish), H),
        "sh_wd": init(ks[6], (Ish, H), Ish),
    }

    hidden_states = jax.random.normal(ks[7], (B, S, H), jnp.float32)

    fwd = jax.jit(functools.partial(deepseek_moe_forward,
                                    top_k=num_experts_per_tok,
                                    norm_topk_prob=True))
    out = jax.block_until_ready(fwd(hidden_states, params))

    ref = reference_forward(hidden_states, params,
                            top_k=num_experts_per_tok, norm_topk_prob=True)
    np.testing.assert_allclose(np.asarray(out), np.asarray(ref),
                               rtol=1e-2, atol=1e-2)

    print("KERNEL_OK")
</pallas_src>

<mosaic_0001>
module attributes {stable_mosaic.version = 11 : i64} {
  func.func private @main(%arg0: i32) attributes {dimension_semantics = [#tpu.dimension_semantics<core_parallel>], iteration_bounds = array<i64: 2>, tpu.core_type = #tpu.core_type<sc_scalar_subcore>, window_params = []} {
    return
  }
}

module attributes {stable_mosaic.version = 11 : i64} {
  func.func private @main(%arg0: i32) attributes {dimension_semantics = [#tpu.dimension_semantics<core_parallel>], iteration_bounds = array<i64: 2>, tpu.core_type = #tpu.core_type<sc_scalar_subcore>, window_params = []} {
    return
  }
}

module attributes {stable_mosaic.version = 11 : i64} {
  func.func @moe_gmm_kernel(%arg0: i32, %arg1: i32, %arg2: memref<7xi32, #tpu.memory_space<smem>>, %arg3: memref<1xi32, #tpu.memory_space<smem>>, %arg4: memref<64x32xbf16, #tpu.memory_space<vmem>>, %arg5: memref<1x32x16xbf16, #tpu.memory_space<vmem>>, %arg6: memref<1x32x16xbf16, #tpu.memory_space<vmem>>, %arg7: memref<1x16x32xbf16, #tpu.memory_space<vmem>>, %arg8: memref<64x1xf32, #tpu.memory_space<vmem>>, %arg9: memref<64x32xf32, #tpu.memory_space<vmem>>, %arg10: memref<64x32xf32, #tpu.memory_space<vmem>>) attributes {dimension_semantics = [#tpu.dimension_semantics<parallel>, #tpu.dimension_semantics<arbitrary>], iteration_bounds = array<i64: 7, 1>, scalar_prefetch = 2 : i64, scratch_operands = 1 : i64, tpu.core_type = #tpu.core_type<tc>, window_params = [{transform_indices = @transform_0, window_bounds = array<i64: 64, 32>}, {transform_indices = @transform_1, window_bounds = array<i64: 1, 32, 16>}, {transform_indices = @transform_2, window_bounds = array<i64: 1, 32, 16>}, {transform_indices = @transform_3, window_bounds = array<i64: 1, 16, 32>}, {transform_indices = @transform_4, window_bounds = array<i64: 64, 1>}, {transform_indices = @transform_5, window_bounds = array<i64: 64, 32>}]} {
    %c0_i32 = arith.constant 0 : i32
    %0 = arith.cmpi eq, %arg1, %c0_i32 : i32
    %1 = arith.extui %0 : i1 to i32
    %c0_i32_0 = arith.constant 0 : i32
    %2 = arith.cmpi ne, %1, %c0_i32_0 : i32
    scf.if %2 {
      %cst = arith.constant 0.000000e+00 : f32
      %10 = vector.broadcast %cst : f32 to vector<64x32xf32>
      %c0_4 = arith.constant 0 : index
      %c0_5 = arith.constant 0 : index
      %11 = vector.load %arg10[%c0_4, %c0_5] : memref<64x32xf32, #tpu.memory_space<vmem>>, vector<64x32xf32>
      tpu.vector_store %arg10[%c0_4, %c0_5], %10 {strides = array<i32>} : memref<64x32xf32, #tpu.memory_space<vmem>>, vector<64x32xf32>,
    } else {
    }
    %c0 = arith.constant 0 : index
    %3 = memref.load %arg3[%c0] : memref<1xi32, #tpu.memory_space<smem>>
    %4 = arith.cmpi slt, %arg0, %3 : i32
    %5 = arith.extui %4 : i1 to i32
    %c0_i32_1 = arith.constant 0 : i32
    %6 = arith.cmpi ne, %5, %c0_i32_1 : i32
    scf.if %6 {
      %c0_4 = arith.constant 0 : index
      %c0_5 = arith.constant 0 : index
      %10 = vector.load %arg4[%c0_4, %c0_5] : memref<64x32xbf16, #tpu.memory_space<vmem>>, vector<64x32xbf16>
      %c0_6 = arith.constant 0 : index
      %c0_7 = arith.constant 0 : index
      %c0_8 = arith.constant 0 : index
      %11 = vector.load %arg5[%c0_6, %c0_7, %c0_8] : memref<1x32x16xbf16, #tpu.memory_space<vmem>>, vector<1x32x16xbf16>
      %12 = vector.shape_cast %11 : vector<1x32x16xbf16> to vector<32x16xbf16>
      %cst = arith.constant dense<0.000000e+00> : vector<64x16xf32>
      %13 = tpu.matmul %10, %12, %cst {dimension_numbers = #tpu.dot_dimension_numbers<[1], [0], [0], [1], [0, 0, 1, 1], [], []>} : vector<64x32xbf16>, vector<32x16xbf16>, vector<64x16xf32> -> vector<64x16xf32>
      %c0_9 = arith.constant 0 : index
      %c0_10 = arith.constant 0 : index
      %c0_11 = arith.constant 0 : index
      %14 = vector.load %arg6[%c0_9, %c0_10, %c0_11] : memref<1x32x16xbf16, #tpu.memory_space<vmem>>, vector<1x32x16xbf16>
      %15 = vector.shape_cast %14 : vector<1x32x16xbf16> to vector<32x16xbf16>
      %cst_12 = arith.constant dense<0.000000e+00> : vector<64x16xf32>
      %16 = tpu.matmul %10, %15, %cst_12 {dimension_numbers = #tpu.dot_dimension_numbers<[1], [0], [0], [1], [0, 0, 1, 1], [], []>} : vector<64x32xbf16>, vector<32x16xbf16>, vector<64x16xf32> -> vector<64x16xf32>
      %17 = arith.negf %13 : vector<64x16xf32>
      %18 = math.exp %17 : vector<64x16xf32>
      %cst_13 = arith.constant 1.000000e+00 : f32
      %19 = vector.broadcast %cst_13 : f32 to vector<64x16xf32>
      %20 = arith.addf %19, %18 : vector<64x16xf32>
      %21 = arith.divf %19, %20 : vector<64x16xf32>
      %22 = arith.mulf %13, %21 : vector<64x16xf32>
      %23 = arith.mulf %22, %16 : vector<64x16xf32>
      %c0_14 = arith.constant 0 : index
      %c0_15 = arith.constant 0 : index
      %24 = vector.load %arg8[%c0_14, %c0_15] : memref<64x1xf32, #tpu.memory_space<vmem>>, vector<64x1xf32>
      %25 = vector.broadcast %24 : vector<64x1xf32> to vector<64x16xf32>
      %26 = arith.mulf %23, %25 : vector<64x16xf32>
      %c0_16 = arith.constant 0 : index
      %c0_17 = arith.constant 0 : index
      %27 = vector.load %arg10[%c0_16, %c0_17] : memref<64x32xf32, #tpu.memory_space<vmem>>, vector<64x32xf32>
      %28 = arith.truncf %26 : vector<64x16xf32> to vector<64x16xbf16>
      %c0_18 = arith.constant 0 : index
      %c0_19 = arith.constant 0 : index
      %c0_20 = arith.constant 0 : index
      %29 = vector.load %arg7[%c0_18, %c0_19, %c0_20] : memref<1x16x32xbf16, #tpu.memory_space<vmem>>, vector<1x16x32xbf16>
      %30 = vector.shape_cast %29 : vector<1x16x32xbf16> to vector<16x32xbf16>
      %cst_21 = arith.constant dense<0.000000e+00> : vector<64x32xf32>
      %31 = tpu.matmul %28, %30, %cst_21 {dimension_numbers = #tpu.dot_dimension_numbers<[1], [0], [0], [1], [0, 0, 1, 1], [], []>} : vector<64x16xbf16>, vector<16x32xbf16>, vector<64x32xf32> -> vector<64x32xf32>
      %32 = arith.addf %27, %31 : vector<64x32xf32>
      %c0_22 = arith.constant 0 : index
      %c0_23 = arith.constant 0 : index
      %33 = vector.load %arg10[%c0_22, %c0_23] : memref<64x32xf32, #tpu.memory_space<vmem>>, vector<64x32xf32>
      tpu.vector_store %arg10[%c0_22, %c0_23], %32 {strides = array<i32>} : memref<64x32xf32, #tpu.memory_space<vmem>>, vector<64x32xf32>,
    } else {
    }
    %c0_i32_2 = arith.constant 0 : i32
    %7 = arith.cmpi eq, %arg1, %c0_i32_2 : i32
    %8 = arith.extui %7 : i1 to i32
    %c0_i32_3 = arith.constant 0 : i32
    %9 = arith.cmpi ne, %8, %c0_i32_3 : i32
    scf.if %9 {
      %c0_4 = arith.constant 0 : index
      %c0_5 = arith.constant 0 : index
      %10 = vector.load %arg10[%c0_4, %c0_5] : memref<64x32xf32, #tpu.memory_space<vmem>>, vector<64x32xf32>
      %c0_6 = arith.constant 0 : index
      %c0_7 = arith.constant 0 : index
      %11 = vector.load %arg9[%c0_6, %c0_7] : memref<64x32xf32, #tpu.memory_space<vmem>>, vector<64x32xf32>
      tpu.vector_store %arg9[%c0_6, %c0_7], %10 {strides = array<i32>} : memref<64x32xf32, #tpu.memory_space<vmem>>, vector<64x32xf32>,
    } else {
    }
    return
  }
  func.func @transform_0(%arg0: i32, %arg1: i32, %arg2: memref<7xi32, #tpu.memory_space<smem>>, %arg3: memref<1xi32, #tpu.memory_space<smem>>) -> (i32, i32) {
    %c0_i32 = arith.constant 0 : i32
    %c0_i32_0 = arith.constant 0 : i32
    return %arg0, %c0_i32 : i32, i32
  }
  func.func @transform_1(%arg0: i32, %arg1: i32, %arg2: memref<7xi32, #tpu.memory_space<smem>>, %arg3: memref<1xi32, #tpu.memory_space<smem>>) -> (i32, i32, i32) {
    %0 = arith.index_cast %arg0 : i32 to index
    %1 = memref.load %arg2[%0] : memref<7xi32, #tpu.memory_space<smem>>
    %c0_i32 = arith.constant 0 : i32
    %c0_i32_0 = arith.constant 0 : i32
    return %1, %c0_i32, %arg1 : i32, i32, i32
  }
  func.func @transform_2(%arg0: i32, %arg1: i32, %arg2: memref<7xi32, #tpu.memory_space<smem>>, %arg3: memref<1xi32, #tpu.memory_space<smem>>) -> (i32, i32, i32) {
    %0 = arith.index_cast %arg0 : i32 to index
    %1 = memref.load %arg2[%0] : memref<7xi32, #tpu.memory_space<smem>>
    %c0_i32 = arith.constant 0 : i32
    %c0_i32_0 = arith.constant 0 : i32
    return %1, %c0_i32, %arg1 : i32, i32, i32
  }
  func.func @transform_3(%arg0: i32, %arg1: i32, %arg2: memref<7xi32, #tpu.memory_space<smem>>, %arg3: memref<1xi32, #tpu.memory_space<smem>>) -> (i32, i32, i32) {
    %0 = arith.index_cast %arg0 : i32 to index
    %1 = memref.load %arg2[%0] : memref<7xi32, #tpu.memory_space<smem>>
    %c0_i32 = arith.constant 0 : i32
    %c0_i32_0 = arith.constant 0 : i32
    return %1, %arg1, %c0_i32 : i32, i32, i32
  }
  func.func @transform_4(%arg0: i32, %arg1: i32, %arg2: memref<7xi32, #tpu.memory_space<smem>>, %arg3: memref<1xi32, #tpu.memory_space<smem>>) -> (i32, i32) {
    %c0_i32 = arith.constant 0 : i32
    %c0_i32_0 = arith.constant 0 : i32
    return %arg0, %c0_i32 : i32, i32
  }
  func.func @transform_5(%arg0: i32, %arg1: i32, %arg2: memref<7xi32, #tpu.memory_space<smem>>, %arg3: memref<1xi32, #tpu.memory_space<smem>>) -> (i32, i32) {
    %c0_i32 = arith.constant 0 : i32
    %c0_i32_0 = arith.constant 0 : i32
    return %arg0, %c0_i32 : i32, i32
  }
}

</mosaic_0001>

<llo_original>
// kernel: custom-call
$region0: #{custom-call}
  %s0 = inlined_call_operand.vmem [shape: u32[7], index: 0, kind: output, shape index: {}]

// kernel: deepseek_moe_forward.1
$region0: #{deepseek_moe_forward.1}
  #allocation0 [shape = 'u32[]', space=smem, size = 0x4, offset = 0x4, fixed_abs, tag = 'smem constant byte address 0x4 - core index']
  #allocation1 [shape = 'u32[144,128]{1,0:T(1,128)}', space=vmem, size = 0x12000, scoped, tag = 'internal scratch']
  #allocation2 [shape = 'f32[64,32]{1,0:T(8,128)}', space=vmem, size = 0x8000, scoped, tag = 'scratch operand']
  #allocation3 [shape = 's32[1]{0}', space=sflag, size = 0x4, scoped, tag = 'scoped memory for deepseek_moe_forward.1']
  #allocation4 [shape = 'u8[512]{0}', space=smem, size = 0x200, scoped, tag = 'prefetched SMEM operand 0']
  #allocation5 [shape = 's32[1]{0:T(128)S(6)}', space=smem, size = 0x200, scoped, tag = 'prefetched SMEM operand 1']
  %s0 = inlined_call_operand.vmem [shape: s32[7], index: 0, kind: input, shape index: {}]
  %s1 = inlined_call_operand.<no memory space> [shape: s32[1], index: 1, kind: input, shape index: {}]
  %s2 = inlined_call_operand.vmem [shape: bf16[448,32], index: 2, kind: input, shape index: {}]
  %s3 = inlined_call_operand.vmem [shape: bf16[6,32,16], index: 3, kind: input, shape index: {}]
  %s4 = inlined_call_operand.vmem [shape: bf16[6,32,16], index: 4, kind: input, shape index: {}]
  %s5 = inlined_call_operand.vmem [shape: bf16[6,16,32], index: 5, kind: input, shape index: {}]
  %s6 = inlined_call_operand.vmem [shape: f32[448,1], index: 6, kind: input, shape index: {}]
  %s7 = inlined_call_operand.vmem [shape: f32[448,32], index: 7, kind: output, shape index: {}]
  %s8 = sld [smem:[#allocation0]]
  $region65: #{deepseek_moe_forward.1} parent=0
    _
  %s10 = ssub.s32 1, %s8
  %s11 = scalar_select 0, %s10, %s8
  %s12 = sshll.u32 %s0, 4
  %s13 = int_to_ptr.vmem [resolvable:$true] %s12
  %15 = dma.vmem_to_smem %s13, 16, [#allocation4], [#allocation3]
  %16 = sst [smem:[#allocation5]] %s1
  %17 = dma.done [#allocation3], 16
  %18 = sfence
  loop: start=0, step=1, limit=9
  $region2: #{deepseek_moe_forward.1} parent=0 // loop_pre_header
    _
  $region3: #{deepseek_moe_forward.1} parent=0 // loop_header
    %s20 = sphi 0, %s24
    %p21 = scmp.ge.s32.totalorder %s20, 9
    %s27 = sphi 0, %s39
    %s28 = sphi 0, %s35
    %s29 = sphi 0, %s27
    %s30 = sphi 0, %s28
    %s31 = sphi 0, %s29
    %s32 = sphi 0, %s30
    %s42 = sphi 0, %s44
    %s45 = sphi 0, %s42
    %s46 = sphi 0, %s45
    %s62 = sphi 0, %s46
    %s72 = sphi 0, %s74
    %s75 = sphi 0, %s72
    %s76 = sphi 0, %s75
    %s92 = sphi 0, %s76
    %s102 = sphi 0, %s104
    %s105 = sphi 0, %s102
    %s106 = sphi 0, %s105
    %s122 = sphi 0, %s106
    %s132 = sphi 0, %s134
    %s135 = sphi 0, %s132
    %s136 = sphi 0, %s135
    %s152 = sphi 0, %s136
    %s158 = sphi 0, %s160
    %s161 = sphi 0, %s158
    %s162 = sphi 0, %s161
    %s178 = sphi 0, %s162
    %s184 = sphi 0, %s186
    %s187 = sphi 0, %s184
    %s188 = sphi 0, %s187
    %s204 = sphi 0, %s188
  $region4: #{deepseek_moe_forward.1} parent=0 // loop_header_branch
    %23 = sbr.rel (%p21) target = $region8
  $region5: #{deepseek_moe_forward.1} parent=0 // loop_body
    %s25 = ssub.s32 %s20, 1
    %s26 = ssub.s32 %s20, 2
    %s33 = sadd.s32 1, %s28
    %p34 = scmp.ge.s32.totalorder %s33, 1
    %s35 = scalar_select %p34, 0, %s33
    %s36 = sadd.s32 1, %s27
    %s37 = scalar_select %p34, %s36, %s27
    %p38 = scmp.ge.s32.totalorder %s37, 7
    %s39 = scalar_select %p38, 0, %s37
    %s40 = ssub.s32 %s27, %s39
    %p41 = scmp.eq.s32.totalorder %s40, 0
    %s43 = sadd.s32 %s42, 1
    %s44 = scalar_select %p41, %s42, %s43
    %p47 = pneg %p41
    %p48 = scmp.eq.s32.totalorder %s20, 6
    %p49 = por %p47, %p48
    %p50 = scmp.ne.s32.totalorder %s42, %s45
    %p51 = scmp.eq.s32.totalorder %s20, 0
    %p52 = por %p50, %p51
    %p53 = scmp.ne.s32.totalorder %s42, %s45
    %p54 = scmp.eq.s32.totalorder %s25, 6
    %p55 = por %p53, %p54
    %p56 = scmp.ne.s32.totalorder %s45, %s46
    %p57 = scmp.eq.s32.totalorder %s25, 0
    %p58 = por %p56, %p57
    %p59 = scmp.ne.s32.totalorder %s45, %s46
    %p60 = scmp.eq.s32.totalorder %s26, 6
    %p61 = por %p59, %p60
    %p63 = scmp.ne.s32.totalorder %s46, %s62
    %p64 = scmp.eq.s32.totalorder %s26, 0
    %p65 = por %p63, %p64
    %s66 = sld [smem:[#allocation4 + %s27]]
    %s67 = sld [smem:[#allocation4 + %s39]]
    %s68 = ssub.s32 %s66, %s67
    %s69 = ssub.s32 %s28, %s35
    %s70 = sor.u32 %s68, %s69
    %p71 = scmp.eq.s32.totalorder %s70, 0
    %s73 = sadd.s32 %s72, 1
    %s74 = scalar_select %p71, %s72, %s73
    %p77 = pneg %p71
    %p78 = scmp.eq.s32.totalorder %s20, 6
    %p79 = por %p77, %p78
    %p80 = scmp.ne.s32.totalorder %s72, %s75
    %p81 = scmp.eq.s32.totalorder %s20, 0
    %p82 = por %p80, %p81
    %p83 = scmp.ne.s32.totalorder %s72, %s75
    %p84 = scmp.eq.s32.totalorder %s25, 6
    %p85 = por %p83, %p84
    %p86 = scmp.ne.s32.totalorder %s75, %s76
    %p87 = scmp.eq.s32.totalorder %s25, 0
    %p88 = por %p86, %p87
    %p89 = scmp.ne.s32.totalorder %s75, %s76
    %p90 = scmp.eq.s32.totalorder %s26, 6
    %p91 = por %p89, %p90
    %p93 = scmp.ne.s32.totalorder %s76, %s92
    %p94 = scmp.eq.s32.totalorder %s26, 0
    %p95 = por %p93, %p94
    %s96 = sld [smem:[#allocation4 + %s27]]
    %s97 = sld [smem:[#allocation4 + %s39]]
    %s98 = ssub.s32 %s96, %s97
    %s99 = ssub.s32 %s28, %s35
    %s100 = sor.u32 %s98, %s99
    %p101 = scmp.eq.s32.totalorder %s100, 0
    %s103 = sadd.s32 %s102, 1
    %s104 = scalar_select %p101, %s102, %s103
    %p107 = pneg %p101
    %p108 = scmp.eq.s32.totalorder %s20, 6
    %p109 = por %p107, %p108
    %p110 = scmp.ne.s32.totalorder %s102, %s105
    %p111 = scmp.eq.s32.totalorder %s20, 0
    %p112 = por %p110, %p111
    %p113 = scmp.ne.s32.totalorder %s102, %s105
    %p114 = scmp.eq.s32.totalorder %s25, 6
    %p115 = por %p113, %p114
    %p116 = scmp.ne.s32.totalorder %s105, %s106
    %p117 = scmp.eq.s32.totalorder %s25, 0
    %p118 = por %p116, %p117
    %p119 = scmp.ne.s32.totalorder %s105, %s106
    %p120 = scmp.eq.s32.totalorder %s26, 6
    %p121 = por %p119, %p120
    %p123 = scmp.ne.s32.totalorder %s106, %s122
    %p124 = scmp.eq.s32.totalorder %s26, 0
    %p125 = por %p123, %p124
    %s126 = sld [smem:[#allocation4 + %s27]]
    %s127 = sld [smem:[#allocation4 + %s39]]
    %s128 = ssub.s32 %s126, %s127
    %s129 = ssub.s32 %s28, %s35
    %s130 = sor.u32 %s128, %s129
    %p131 = scmp.eq.s32.totalorder %s130, 0
    %s133 = sadd.s32 %s132, 1
    %s134 = scalar_select %p131, %s132, %s133
    %p137 = pneg %p131
    %p138 = scmp.eq.s32.totalorder %s20, 6
    %p139 = por %p137, %p138
    %p140 = scmp.ne.s32.totalorder %s132, %s135
    %p141 = scmp.eq.s32.totalorder %s20, 0
    %p142 = por %p140, %p141
    %p143 = scmp.ne.s32.totalorder %s132, %s135
    %p144 = scmp.eq.s32.totalorder %s25, 6
    %p145 = por %p143, %p144
    %p146 = scmp.ne.s32.totalorder %s135, %s136
    %p147 = scmp.eq.s32.totalorder %s25, 0
    %p148 = por %p146, %p147
    %p149 = scmp.ne.s32.totalorder %s135, %s136
    %p150 = scmp.eq.s32.totalorder %s26, 6
    %p151 = por %p149, %p150
    %p153 = scmp.ne.s32.totalorder %s136, %s152
    %p154 = scmp.eq.s32.totalorder %s26, 0
    %p155 = por %p153, %p154
    %s156 = ssub.s32 %s27, %s39
    %p157 = scmp.eq.s32.totalorder %s156, 0
    %s159 = sadd.s32 %s158, 1
    %s160 = scalar_select %p157, %s158, %s159
    %p163 = pneg %p157
    %p164 = scmp.eq.s32.totalorder %s20, 6
    %p165 = por %p163, %p164
    %p166 = scmp.ne.s32.totalorder %s158, %s161
    %p167 = scmp.eq.s32.totalorder %s20, 0
    %p168 = por %p166, %p167
    %p169 = scmp.ne.s32.totalorder %s158, %s161
    %p170 = scmp.eq.s32.totalorder %s25, 6
    %p171 = por %p169, %p170
    %p172 = scmp.ne.s32.totalorder %s161, %s162
    %p173 = scmp.eq.s32.totalorder %s25, 0
    %p174 = por %p172, %p173
    %p175 = scmp.ne.s32.totalorder %s161, %s162
    %p176 = scmp.eq.s32.totalorder %s26, 6
    %p177 = por %p175, %p176
    %p179 = scmp.ne.s32.totalorder %s162, %s178
    %p180 = scmp.eq.s32.totalorder %s26, 0
    %p181 = por %p179, %p180
    %s182 = ssub.s32 %s27, %s39
    %p183 = scmp.eq.s32.totalorder %s182, 0
    %s185 = sadd.s32 %s184, 1
    %s186 = scalar_select %p183, %s184, %s185
    %p189 = pneg %p183
    %p190 = scmp.eq.s32.totalorder %s20, 6
    %p191 = por %p189, %p190
    %p192 = scmp.ne.s32.totalorder %s184, %s187
    %p193 = scmp.eq.s32.totalorder %s20, 0
    %p194 = por %p192, %p193
    %p195 = scmp.ne.s32.totalorder %s184, %s187
    %p196 = scmp.eq.s32.totalorder %s25, 6
    %p197 = por %p195, %p196
    %p198 = scmp.ne.s32.totalorder %s187, %s188
    %p199 = scmp.eq.s32.totalorder %s25, 0
    %p200 = por %p198, %p199
    %p201 = scmp.ne.s32.totalorder %s187, %s188
    %p202 = scmp.eq.s32.totalorder %s26, 6
    %p203 = por %p201, %p202
    %p205 = scmp.ne.s32.totalorder %s188, %s204
    %p206 = scmp.eq.s32.totalorder %s26, 0
    %p207 = por %p205, %p206
    %p208 = scmp.le.s32.totalorder 1, %s20
    %p209 = scmp.lt.s32.totalorder %s20, 8
    %p210 = pnand %p208, %p209
    %p211 = pneg %p210
    // Predicated region
    $region9: #{deepseek_moe_forward.1} parent=5 // pred_check
      _
    $region10: #{deepseek_moe_forward.1} parent=5 // pred_check_branch
      %213 = sbr.rel (%p210) target = $region12
    $region11: #{deepseek_moe_forward.1} parent=5 // pred_region
      %s214 = ssub.s32 %s20, 1
    $region12: #{deepseek_moe_forward.1} parent=5 // pred_fallthru
      _
    %p215 = scmp.lt.s32.totalorder %s20, 7
    // Predicated region
    $region13: #{deepseek_moe_forward.1} parent=5 // pred_check
      %p216 = pneg %p215
    $region14: #{deepseek_moe_forward.1} parent=5 // pred_check_branch
      %218 = sbr.rel (%p216) target = $region16
    $region15: #{deepseek_moe_forward.1} parent=5 // pred_region
      // Predicated region
      $region17: #{deepseek_moe_forward.1} parent=15 // pred_check
        %p219 = pneg %p52
      $region18: #{deepseek_moe_forward.1} parent=15 // pred_check_branch
        %221 = sbr.rel (%p219) target = $region20
      $region19: #{deepseek_moe_forward.1} parent=15 // pred_region
        %s222 = smul.u32 8, %s27
        %p223 = scmp.lt.s32.totalorder %s222, 55
        %s224 = scalar_select %p223, %s222, 55
        %s225 = smul.addr %s224, 4
        %s226 = scalar_lea.vmem %s2, %s225
        %s227 = smul.u32 8, %s27
      $region20: #{deepseek_moe_forward.1} parent=15 // pred_fallthru
        _
      // Predicated region
      $region21: #{deepseek_moe_forward.1} parent=15 // pred_check
        %p228 = pneg %p82
      $region22: #{deepseek_moe_forward.1} parent=15 // pred_check_branch
        %230 = sbr.rel (%p228) target = $region24
      $region23: #{deepseek_moe_forward.1} parent=15 // pred_region
        %s231 = sld [smem:[#allocation4 + %s27]]
        %p232 = scmp.lt.s32.totalorder %s231, 5
        %s233 = scalar_select %p232, %s231, 5
        %p234 = scmp.lt.s32.totalorder %s28, 0
        %s235 = scalar_select %p234, %s28, 0
        %s236 = smul.addr %s233, 4
        %s237 = sadd.s32 %s235, %s236
        %s238 = smul.addr %s237, 4
        %s239 = scalar_lea.vmem %s3, %s238
        %s240 = sld [smem:[#allocation4 + %s27]]
      $region24: #{deepseek_moe_forward.1} parent=15 // pred_fallthru
        _
      // Predicated region
      $region25: #{deepseek_moe_forward.1} parent=15 // pred_check
        %p241 = pneg %p112
      $region26: #{deepseek_moe_forward.1} parent=15 // pred_check_branch
        %243 = sbr.rel (%p241) target = $region28
      $region27: #{deepseek_moe_forward.1} parent=15 // pred_region
        %s244 = sld [smem:[#allocation4 + %s27]]
        %p245 = scmp.lt.s32.totalorder %s244, 5
        %s246 = scalar_select %p245, %s244, 5
        %p247 = scmp.lt.s32.totalorder %s28, 0
        %s248 = scalar_select %p247, %s28, 0
        %s249 = smul.addr %s246, 4
        %s250 = sadd.s32 %s248, %s249
        %s251 = smul.addr %s250, 4
        %s252 = scalar_lea.vmem %s4, %s251
        %s253 = sld [smem:[#allocation4 + %s27]]
      $region28: #{deepseek_moe_forward.1} parent=15 // pred_fallthru
        _
      // Predicated region
      $region29: #{deepseek_moe_forward.1} parent=15 // pred_check
        %p254 = pneg %p142
      $region30: #{deepseek_moe_forward.1} parent=15 // pred_check_branch
        %256 = sbr.rel (%p254) target = $region32
      $region31: #{deepseek_moe_forward.1} parent=15 // pred_region
        %s257 = sld [smem:[#allocation4 + %s27]]
        %s258 = smul.u32 2, %s28
        %p259 = scmp.lt.s32.totalorder %s257, 5
        %s260 = scalar_select %p259, %s257, 5
        %p261 = scmp.lt.s32.totalorder %s258, 1
        %s262 = scalar_select %p261, %s258, 1
        %s263 = smul.addr %s260, 2
        %s264 = sadd.s32 %s262, %s263
        %s265 = smul.addr %s264, 4
        %s266 = scalar_lea.vmem %s5, %s265
        %s267 = sld [smem:[#allocation4 + %s27]]
        %s268 = smul.u32 2, %s28
      $region32: #{deepseek_moe_forward.1} parent=15 // pred_fallthru
        _
      // Predicated region
      $region33: #{deepseek_moe_forward.1} parent=15 // pred_check
        %p269 = pneg %p168
      $region34: #{deepseek_moe_forward.1} parent=15 // pred_check_branch
        %271 = sbr.rel (%p269) target = $region36
      $region35: #{deepseek_moe_forward.1} parent=15 // pred_region
        %s272 = smul.u32 8, %s27
        %p273 = scmp.lt.s32.totalorder %s272, 55
        %s274 = scalar_select %p273, %s272, 55
        %s275 = smul.addr %s274, 8
        %s276 = scalar_lea.vmem %s6, %s275
        %s277 = smul.u32 8, %s27
      $region36: #{deepseek_moe_forward.1} parent=15 // pred_fallthru
        _
    $region16: #{deepseek_moe_forward.1} parent=5 // pred_fallthru
      _
    %p278 = scmp.le.s32.totalorder 1, %s20
    %p279 = scmp.lt.s32.totalorder %s20, 8
    %p280 = pnand %p278, %p279
    %p281 = pneg %p280
    // Predicated region
    $region37: #{deepseek_moe_forward.1} parent=5 // pred_check
      _
    $region38: #{deepseek_moe_forward.1} parent=5 // pred_check_branch
      %283 = sbr.rel (%p280) target = $region40
    $region39: #{deepseek_moe_forward.1} parent=5 // pred_region
      %s284 = ssub.s32 %s20, 1
      %s285 = smul.u32 8, %s29
      %p286 = scmp.lt.s32.totalorder %s285, 55
      %s287 = scalar_select %p286, %s285, 55
      %s288 = smul.addr %s287, 4
      %s289 = scalar_lea.vmem %s2, %s288
      %p290 = pneg %p58
      %p291 = pneg %p55
      %s292 = sld [smem:[#allocation4 + %s29]]
      %p293 = scmp.lt.s32.totalorder %s292, 5
      %s294 = scalar_select %p293, %s292, 5
      %p295 = scmp.lt.s32.totalorder %s30, 0
      %s296 = scalar_select %p295, %s30, 0
      %s297 = smul.addr %s294, 4
      %s298 = sadd.s32 %s296, %s297
      %s299 = smul.addr %s298, 4
      %s300 = scalar_lea.vmem %s3, %s299
      %p301 = pneg %p88
      %p302 = pneg %p85
      %s303 = sld [smem:[#allocation4 + %s29]]
      %p304 = scmp.lt.s32.totalorder %s303, 5
      %s305 = scalar_select %p304, %s303, 5
      %p306 = scmp.lt.s32.totalorder %s30, 0
      %s307 = scalar_select %p306, %s30, 0
      %s308 = smul.addr %s305, 4
      %s309 = sadd.s32 %s307, %s308
      %s310 = smul.addr %s309, 4
      %s311 = scalar_lea.vmem %s4, %s310
      %p312 = pneg %p118
      %p313 = pneg %p115
      %s314 = sld [smem:[#allocation4 + %s29]]
      %s315 = smul.u32 2, %s30
      %p316 = scmp.lt.s32.totalorder %s314, 5
      %s317 = scalar_select %p316, %s314, 5
      %p318 = scmp.lt.s32.totalorder %s315, 1
      %s319 = scalar_select %p318, %s315, 1
      %s320 = smul.addr %s317, 2
      %s321 = sadd.s32 %s319, %s320
      %s322 = smul.addr %s321, 4
      %s323 = scalar_lea.vmem %s5, %s322
      %p324 = pneg %p148
      %p325 = pneg %p145
      %s326 = smul.u32 8, %s29
      %p327 = scmp.lt.s32.totalorder %s326, 55
      %s328 = scalar_select %p327, %s326, 55
      %s329 = smul.addr %s328, 8
      %s330 = scalar_lea.vmem %s6, %s329
      %p331 = pneg %p174
      %p332 = pneg %p171
      %p333 = pneg %p200
      %p334 = pneg %p197
      %s335 = smul.u32 8, %s29
      %p336 = scmp.lt.s32.totalorder %s335, 55
      %s337 = scalar_select %p336, %s335, 55
      %s338 = smul.addr %s337, 8
      %s339 = scalar_lea.vmem %s7, %s338
      %s340 = smul.u32 8, %s29
      %p341 = scmp.lt.s32.totalorder %s340, 55
      %s342 = scalar_select %p341, %s340, 55
      %s343 = smul.addr %s342, 4
      %s344 = scalar_lea.vmem %s2, %s343
      %s345 = smul.u32 8, %s29
      %s346 = sld [smem:[#allocation4 + %s29]]
      %p347 = scmp.lt.s32.totalorder %s346, 5
      %s348 = scalar_select %p347, %s346, 5
      %p349 = scmp.lt.s32.totalorder %s30, 0
      %s350 = scalar_select %p349, %s30, 0
      %s351 = smul.addr %s348, 4
      %s352 = sadd.s32 %s350, %s351
      %s353 = smul.addr %s352, 4
      %s354 = scalar_lea.vmem %s3, %s353
      %s355 = sld [smem:[#allocation4 + %s29]]
      %s356 = sld [smem:[#allocation4 + %s29]]
      %p357 = scmp.lt.s32.totalorder %s356, 5
      %s358 = scalar_select %p357, %s356, 5
      %p359 = scmp.lt.s32.totalorder %s30, 0
      %s360 = scalar_select %p359, %s30, 0
      %s361 = smul.addr %s358, 4
      %s362 = sadd.s32 %s360, %s361
      %s363 = smul.addr %s362, 4
      %s364 = scalar_lea.vmem %s4, %s363
      %s365 = sld [smem:[#allocation4 + %s29]]
      %s366 = sld [smem:[#allocation4 + %s29]]
      %s367 = smul.u32 2, %s30
      %p368 = scmp.lt.s32.totalorder %s366, 5
      %s369 = scalar_select %p368, %s366, 5
      %p370 = scmp.lt.s32.totalorder %s367, 1
      %s371 = scalar_select %p370, %s367, 1
      %s372 = smul.addr %s369, 2
      %s373 = sadd.s32 %s371, %s372
      %s374 = smul.addr %s373, 4
      %s375 = scalar_lea.vmem %s5, %s374
      %s376 = sld [smem:[#allocation4 + %s29]]
      %s377 = smul.u32 2, %s30
      %s378 = smul.u32 8, %s29
      %p379 = scmp.lt.s32.totalorder %s378, 55
      %s380 = scalar_select %p379, %s378, 55
      %s381 = smul.addr %s380, 8
      %s382 = scalar_lea.vmem %s6, %s381
      %s383 = smul.u32 8, %s29
      %s384 = smul.u32 8, %s29
      %p385 = scmp.lt.s32.totalorder %s384, 55
      %s386 = scalar_select %p385, %s384, 55
      %s387 = smul.addr %s386, 8
      %s388 = scalar_lea.vmem %s7, %s387
      %s389 = smul.u32 8, %s29
      %p391 = scmp.eq.s32.totalorder %s30, 0
      // Predicated region
      $region41: #{deepseek_moe_forward.1} parent=39 // pred_check
        %p392 = pneg %p391
      $region42: #{deepseek_moe_forward.1} parent=39 // pred_check_branch
        %394 = sbr.rel (%p392) target = $region44
      $region43: #{deepseek_moe_forward.1} parent=39 // pred_region
        %vm395 = vcmask 261120
        %396 = vst.msk [vmem:[#allocation2] sm:$0xff] %vm395, 0.0
        %397 = vst.msk [vmem:[#allocation2 + $0x8] sm:$0xff] %vm395, 0.0
        %398 = vst.msk [vmem:[#allocation2 + $0x10] sm:$0xff] %vm395, 0.0
        %399 = vst.msk [vmem:[#allocation2 + $0x18] sm:$0xff] %vm395, 0.0
        %400 = vst.msk [vmem:[#allocation2 + $0x20] sm:$0xff] %vm395, 0.0
        %401 = vst.msk [vmem:[#allocation2 + $0x28] sm:$0xff] %vm395, 0.0
        %402 = vst.msk [vmem:[#allocation2 + $0x30] sm:$0xff] %vm395, 0.0
        %403 = vst.msk [vmem:[#allocation2 + $0x38] sm:$0xff] %vm395, 0.0
      $region44: #{deepseek_moe_forward.1} parent=39 // pred_fallthru
        _
      %s404 = sld [smem:[#allocation5]]
      %p405 = scmp.lt.s32.totalorder %s29, %s404
      // Predicated region
      $region45: #{deepseek_moe_forward.1} parent=39 // pred_check
        %p406 = pneg %p405
      $region46: #{deepseek_moe_forward.1} parent=39 // pred_check_branch
        %408 = sbr.rel (%p406) target = $region48
      $region47: #{deepseek_moe_forward.1} parent=39 // pred_region
        %v409 = vld [vmem:[%s344] sm:$0xf]
        %v410 = vld [vmem:[%s344 + $0x4] sm:$0xf]
        %v411 = vld [vmem:[%s344 + $0x8] sm:$0xf]
        %v412 = vld [vmem:[%s344 + $0xc] sm:$0xf]
        %v413 = vld [vmem:[%s344 + $0x10] sm:$0xf]
        %v414 = vld [vmem:[%s344 + $0x14] sm:$0xf]
        %v415 = vld [vmem:[%s344 + $0x18] sm:$0xf]
        %v416 = vld [vmem:[%s344 + $0x1c] sm:$0xf]
        %v417 = vld [vmem:[%s354] sm:$0xf]
        %v418 = vld [vmem:[%s354 + $0x4] sm:$0xf]
        %v419 = vld [vmem:[%s354 + $0x8] sm:$0xf]
        %v420 = vld [vmem:[%s354 + $0xc] sm:$0xf]
        %v429 = vunpack.c.l.b16 %v409
        %v430 = vunpack.c.l.b16 %v410
        %v431 = vunpack.c.l.b16 %v411
        %v432 = vunpack.c.l.b16 %v412
        %v433 = vunpack.c.l.b16 %v413
        %v434 = vunpack.c.l.b16 %v414
        %v435 = vunpack.c.l.b16 %v415
        %v436 = vunpack.c.l.b16 %v416
        %v437 = vpack.c.b16 %v430, %v429
        %v438 = vpack.c.b16 %v432, %v431
        %v439 = vpack.c.b16 %v434, %v433
        %v440 = vpack.c.b16 %v436, %v435
        %v445 = vunpack.c.l.b16 %v417
        %v446 = vunpack.c.l.b16 %v418
        %v447 = vunpack.c.l.b16 %v419
        %v448 = vunpack.c.l.b16 %v420
        %v449 = vpack.c.b16 %v446, %v445
        %v450 = vpack.c.b16 %v448, %v447
        %vm453 = vcmask 261120
        %v455 = vsel %vm453, %v437, 0
        %v458 = vsel %vm453, %v438, 0
        %v461 = vsel %vm453, %v439, 0
        %v464 = vsel %vm453, %v440, 0
        %466 = vmatprep.subr.bf16.mxu0 0
        %467 = vmatpush1.bf16.msra.mxu0 %v449
        %468 = vmatprep.subr.bf16.mxu0 0
        %469 = vmatpush1.bf16.msra.mxu0 %v450
        %470 = vmatprep.subr.bf16.mxu0 0
        %471 = vmatpush1.bf16.msra.mxu0 0
        %472 = vmatprep.subr.bf16.mxu0 0
        %473 = vmatpush1.bf16.msra.mxu0 0
        %474 = vmatprep.subr.bf16.mxu0 0
        %475 = vmatpush1.bf16.msra.mxu0 0
        %476 = vmatprep.subr.bf16.mxu0 0
        %477 = vmatpush1.bf16.msra.mxu0 0
        %478 = vmatprep.subr.bf16.mxu0 0
        %479 = vmatpush1.bf16.msra.mxu0 0
        %480 = vmatprep.subr.bf16.mxu0 0
        %481 = vmatpush1.bf16.msra.mxu0 0
        %482 = vmatprep.subr.bf16.mxu0 0
        %483 = vmatpush1.bf16.msra.mxu0 0
        %484 = vmatprep.subr.bf16.mxu0 0
        %485 = vmatpush1.bf16.msra.mxu0 0
        %486 = vmatprep.subr.bf16.mxu0 0
        %487 = vmatpush1.bf16.msra.mxu0 0
        %488 = vmatprep.subr.bf16.mxu0 0
        %489 = vmatpush1.bf16.msra.mxu0 0
        %490 = vmatprep.subr.bf16.mxu0 0
        %491 = vmatpush1.bf16.msra.mxu0 0
        %492 = vmatprep.subr.bf16.mxu0 0
        %493 = vmatpush1.bf16.msra.mxu0 0
        %494 = vmatprep.subr.bf16.mxu0 0
        %495 = vmatpush1.bf16.msra.mxu0 0
        %496 = vmatprep.subr.bf16.mxu0 0
        %497 = vmatpush1.bf16.msra.mxu0 0
        %498 = vmatprep.mubr.bf16.mxu0 0
        %499 = vmatmul.mubr.bf16.gmra.mrb[0].mxu0 %v455
        %v500 = vpop.f32.mrb[0].mxu0
        %v501 = vadd.f32 0.0, %v500
        %v502 = vpop.f32.mrb[0].mxu0
        %v503 = vpop.f32.mrb[0].mxu0
        %v504 = vadd.f32 0.0, %v503
        %v505 = vpop.f32.mrb[0].mxu0
        %506 = vmatprep.mubr.bf16.mxu0 0
        %507 = vmatmul.mubr.bf16.gmra.mrb[0].mxu0 %v458
        %v508 = vpop.f32.mrb[0].mxu0
        %v509 = vadd.f32 0.0, %v508
        %v510 = vpop.f32.mrb[0].mxu0
        %v511 = vpop.f32.mrb[0].mxu0
        %v512 = vadd.f32 0.0, %v511
        %v513 = vpop.f32.mrb[0].mxu0
        %514 = vmatprep.mubr.bf16.mxu0 0
        %515 = vmatmul.mubr.bf16.gmra.mrb[0].mxu0 %v461
        %v516 = vpop.f32.mrb[0].mxu0
        %v517 = vadd.f32 0.0, %v516
        %v518 = vpop.f32.mrb[0].mxu0
        %v519 = vpop.f32.mrb[0].mxu0
        %v520 = vadd.f32 0.0, %v519
        %v521 = vpop.f32.mrb[0].mxu0
        %522 = vmatprep.mubr.bf16.mxu0 0
        %523 = vmatmul.mubr.bf16.gmra.mrb[0].mxu0 %v464
        %v524 = vpop.f32.mrb[0].mxu0
        %v525 = vadd.f32 0.0, %v524
        %v526 = vpop.f32.mrb[0].mxu0
        %v527 = vpop.f32.mrb[0].mxu0
        %v528 = vadd.f32 0.0, %v527
        %v529 = vpop.f32.mrb[0].mxu0
        %530 = vdwg.mxu0
        %v531 = vld [vmem:[%s364] sm:$0xf]
        %v532 = vld [vmem:[%s364 + $0x4] sm:$0xf]
        %v533 = vld [vmem:[%s364 + $0x8] sm:$0xf]
        %v534 = vld [vmem:[%s364 + $0xc] sm:$0xf]
        %v539 = vunpack.c.l.b16 %v531
        %v540 = vunpack.c.l.b16 %v532
        %v541 = vunpack.c.l.b16 %v533
        %v542 = vunpack.c.l.b16 %v534
        %v543 = vpack.c.b16 %v540, %v539
        %v544 = vpack.c.b16 %v542, %v541
        %547 = vmatprep.subr.bf16.mxu0 0
        %548 = vmatpush1.bf16.msra.mxu0 %v543
        %549 = vmatprep.subr.bf16.mxu0 0
        %550 = vmatpush1.bf16.msra.mxu0 %v544
        %551 = vmatprep.subr.bf16.mxu0 0
        %552 = vmatpush1.bf16.msra.mxu0 0
        %553 = vmatprep.subr.bf16.mxu0 0
        %554 = vmatpush1.bf16.msra.mxu0 0
        %555 = vmatprep.subr.bf16.mxu0 0
        %556 = vmatpush1.bf16.msra.mxu0 0
        %557 = vmatprep.subr.bf16.mxu0 0
        %558 = vmatpush1.bf16.msra.mxu0 0
        %559 = vmatprep.subr.bf16.mxu0 0
        %560 = vmatpush1.bf16.msra.mxu0 0
        %561 = vmatprep.subr.bf16.mxu0 0
        %562 = vmatpush1.bf16.msra.mxu0 0
        %563 = vmatprep.subr.bf16.mxu0 0
        %564 = vmatpush1.bf16.msra.mxu0 0
        %565 = vmatprep.subr.bf16.mxu0 0
        %566 = vmatpush1.bf16.msra.mxu0 0
        %567 = vmatprep.subr.bf16.mxu0 0
        %568 = vmatpush1.bf16.msra.mxu0 0
        %569 = vmatprep.subr.bf16.mxu0 0
        %570 = vmatpush1.bf16.msra.mxu0 0
        %571 = vmatprep.subr.bf16.mxu0 0
        %572 = vmatpush1.bf16.msra.mxu0 0
        %573 = vmatprep.subr.bf16.mxu0 0
        %574 = vmatpush1.bf16.msra.mxu0 0
        %575 = vmatprep.subr.bf16.mxu0 0
        %576 = vmatpush1.bf16.msra.mxu0 0
        %577 = vmatprep.subr.bf16.mxu0 0
        %578 = vmatpush1.bf16.msra.mxu0 0
        %579 = vmatprep.mubr.bf16.mxu0 0
        %580 = vmatmul.mubr.bf16.gmra.mrb[0].mxu0 %v455
        %v581 = vpop.f32.mrb[0].mxu0
        %v582 = vadd.f32 0.0, %v581
        %v583 = vpop.f32.mrb[0].mxu0
        %v584 = vpop.f32.mrb[0].mxu0
        %v585 = vadd.f32 0.0, %v584
        %v586 = vpop.f32.mrb[0].mxu0
        %587 = vmatprep.mubr.bf16.mxu0 0
        %588 = vmatmul.mubr.bf16.gmra.mrb[0].mxu0 %v458
        %v589 = vpop.f32.mrb[0].mxu0
        %v590 = vadd.f32 0.0, %v589
        %v591 = vpop.f32.mrb[0].mxu0
        %v592 = vpop.f32.mrb[0].mxu0
        %v593 = vadd.f32 0.0, %v592
        %v594 = vpop.f32.mrb[0].mxu0
        %595 = vmatprep.mubr.bf16.mxu0 0
        %596 = vmatmul.mubr.bf16.gmra.mrb[0].mxu0 %v461
        %v597 = vpop.f32.mrb[0].mxu0
        %v598 = vadd.f32 0.0, %v597
        %v599 = vpop.f32.mrb[0].mxu0
        %v600 = vpop.f32.mrb[0].mxu0
        %v601 = vadd.f32 0.0, %v600
        %v602 = vpop.f32.mrb[0].mxu0
        %603 = vmatprep.mubr.bf16.mxu0 0
        %604 = vmatmul.mubr.bf16.gmra.mrb[0].mxu0 %v464
        %v605 = vpop.f32.mrb[0].mxu0
        %v606 = vadd.f32 0.0, %v605
        %v607 = vpop.f32.mrb[0].mxu0
        %v608 = vpop.f32.mrb[0].mxu0
        %v609 = vadd.f32 0.0, %v608
        %v610 = vpop.f32.mrb[0].mxu0
        %611 = vdwg.mxu0
        %v612 = vxor.u32 %v501, 2147483648
        %v613 = vxor.u32 %v504, 2147483648
        %v614 = vxor.u32 %v509, 2147483648
        %v615 = vxor.u32 %v512, 2147483648
        %v616 = vxor.u32 %v517, 2147483648
        %v617 = vxor.u32 %v520, 2147483648
        %v618 = vxor.u32 %v525, 2147483648
        %v619 = vxor.u32 %v528, 2147483648
        %v620 = vmul.f32 %v612, 1.442695
        %v621 = vpow.pop %v620
        %v622 = vmul.f32 %v613, 1.442695
        %v623 = vpow.pop %v622
        %v624 = vmul.f32 %v614, 1.442695
        %v625 = vpow.pop %v624
        %v626 = vmul.f32 %v615, 1.442695
        %v627 = vpow.pop %v626
        %v628 = vmul.f32 %v616, 1.442695
        %v629 = vpow.pop %v628
        %v630 = vmul.f32 %v617, 1.442695
        %v631 = vpow.pop %v630
        %v632 = vmul.f32 %v618, 1.442695
        %v633 = vpow.pop %v632
        %v634 = vmul.f32 %v619, 1.442695
        %v635 = vpow.pop %v634
        %v636 = vadd.f32 %v621, 1.0
        %v637 = vadd.f32 %v623, 1.0
        %v638 = vadd.f32 %v625, 1.0
        %v639 = vadd.f32 %v627, 1.0
        %v640 = vadd.f32 %v629, 1.0
        %v641 = vadd.f32 %v631, 1.0
        %v642 = vadd.f32 %v633, 1.0
        %v643 = vadd.f32 %v635, 1.0
        %v644 = vrcp.pop %v636
        %v645 = vmul.f32 1.0, %v644
        %v646 = vrcp.pop %v637
        %v647 = vmul.f32 1.0, %v646
        %v648 = vrcp.pop %v638
        %v649 = vmul.f32 1.0, %v648
        %v650 = vrcp.pop %v639
        %v651 = vmul.f32 1.0, %v650
        %v652 = vrcp.pop %v640
        %v653 = vmul.f32 1.0, %v652
        %v654 = vrcp.pop %v641
        %v655 = vmul.f32 1.0, %v654
        %v656 = vrcp.pop %v642
        %v657 = vmul.f32 1.0, %v656
        %v658 = vrcp.pop %v643
        %v659 = vmul.f32 1.0, %v658
        %v660 = vmul.f32 %v501, %v645
        %v661 = vmul.f32 %v504, %v647
        %v662 = vmul.f32 %v509, %v649
        %v663 = vmul.f32 %v512, %v651
        %v664 = vmul.f32 %v517, %v653
        %v665 = vmul.f32 %v520, %v655
        %v666 = vmul.f32 %v525, %v657
        %v667 = vmul.f32 %v528, %v659
        %v668 = vmul.f32 %v660, %v582
        %v669 = vmul.f32 %v661, %v585
        %v670 = vmul.f32 %v662, %v590
        %v671 = vmul.f32 %v663, %v593
        %v672 = vmul.f32 %v664, %v598
        %v673 = vmul.f32 %v665, %v601
        %v674 = vmul.f32 %v666, %v606
        %v675 = vmul.f32 %v667, %v609
        %v676 = vld [vmem:[%s382] sm:$0xff]
        %v677 = vld [vmem:[%s382 + $0x8] sm:$0xff]
        %v678 = vld [vmem:[%s382 + $0x10] sm:$0xff]
        %v679 = vld [vmem:[%s382 + $0x18] sm:$0xff]
        %v680 = vld [vmem:[%s382 + $0x20] sm:$0xff]
        %v681 = vld [vmem:[%s382 + $0x28] sm:$0xff]
        %v682 = vld [vmem:[%s382 + $0x30] sm:$0xff]
        %v683 = vld [vmem:[%s382 + $0x38] sm:$0xff]
        %685 = vset.pattern.permute.xlu0 0
        %686 = vperm.xlu0 %685, %v676
        %v687 = vpop.permute.xlu0 %686
        %690 = vset.pattern.permute.xlu0 0
        %691 = vperm.xlu0 %690, %v677
        %v692 = vpop.permute.xlu0 %691
        %695 = vset.pattern.permute.xlu0 0
        %696 = vperm.xlu0 %695, %v678
        %v697 = vpop.permute.xlu0 %696
        %700 = vset.pattern.permute.xlu0 0
        %701 = vperm.xlu0 %700, %v679
        %v702 = vpop.permute.xlu0 %701
        %705 = vset.pattern.permute.xlu0 0
        %706 = vperm.xlu0 %705, %v680
        %v707 = vpop.permute.xlu0 %706
        %710 = vset.pattern.permute.xlu0 0
        %711 = vperm.xlu0 %710, %v681
        %v712 = vpop.permute.xlu0 %711
        %715 = vset.pattern.permute.xlu0 0
        %716 = vperm.xlu0 %715, %v682
        %v717 = vpop.permute.xlu0 %716
        %720 = vset.pattern.permute.xlu0 0
        %721 = vperm.xlu0 %720, %v683
        %v722 = vpop.permute.xlu0 %721
        %v724 = vmul.f32 %v668, %v687
        %v725 = vmul.f32 %v669, %v692
        %v726 = vmul.f32 %v670, %v697
        %v727 = vmul.f32 %v671, %v702
        %v728 = vmul.f32 %v672, %v707
        %v729 = vmul.f32 %v673, %v712
        %v730 = vmul.f32 %v674, %v717
        %v731 = vmul.f32 %v675, %v722
        %v732 = vld [vmem:[#allocation2] sm:$0xff]
        %v733 = vld [vmem:[#allocation2 + $0x8] sm:$0xff]
        %v734 = vld [vmem:[#allocation2 + $0x10] sm:$0xff]
        %v735 = vld [vmem:[#allocation2 + $0x18] sm:$0xff]
        %v736 = vld [vmem:[#allocation2 + $0x20] sm:$0xff]
        %v737 = vld [vmem:[#allocation2 + $0x28] sm:$0xff]
        %v738 = vld [vmem:[#allocation2 + $0x30] sm:$0xff]
        %v739 = vld [vmem:[#allocation2 + $0x38] sm:$0xff]
        %v740 = vpack.c.bf16 %v725, %v724
        %v741 = vpack.c.bf16 %v727, %v726
        %v742 = vpack.c.bf16 %v729, %v728
        %v743 = vpack.c.bf16 %v731, %v730
        %v744 = vld [vmem:[%s375] sm:$0xf]
        %v745 = vld [vmem:[%s375 + $0x4] sm:$0xf]
        %v748 = vunpack.c.l.b16 %v744
        %v749 = vunpack.c.l.b16 %v745
        %v750 = vpack.c.b16 %v749, %v748
        %vm752 = vcmask 130048
        %v754 = vsel %vm752, %v740, 0
        %v757 = vsel %vm752, %v741, 0
        %v760 = vsel %vm752, %v742, 0
        %v763 = vsel %vm752, %v743, 0
        %765 = vmatprep.subr.bf16.mxu0 0
        %766 = vmatpush1.bf16.msra.mxu0 %v750
        %767 = vmatprep.subr.bf16.mxu0 0
        %768 = vmatpush1.bf16.msra.mxu0 0
        %769 = vmatprep.subr.bf16.mxu0 0
        %770 = vmatpush1.bf16.msra.mxu0 0
        %771 = vmatprep.subr.bf16.mxu0 0
        %772 = vmatpush1.bf16.msra.mxu0 0
        %773 = vmatprep.subr.bf16.mxu0 0
        %774 = vmatpush1.bf16.msra.mxu0 0
        %775 = vmatprep.subr.bf16.mxu0 0
        %776 = vmatpush1.bf16.msra.mxu0 0
        %777 = vmatprep.subr.bf16.mxu0 0
        %778 = vmatpush1.bf16.msra.mxu0 0
        %779 = vmatprep.subr.bf16.mxu0 0
        %780 = vmatpush1.bf16.msra.mxu0 0
        %781 = vmatprep.subr.bf16.mxu0 0
        %782 = vmatpush1.bf16.msra.mxu0 0
        %783 = vmatprep.subr.bf16.mxu0 0
        %784 = vmatpush1.bf16.msra.mxu0 0
        %785 = vmatprep.subr.bf16.mxu0 0
        %786 = vmatpush1.bf16.msra.mxu0 0
        %787 = vmatprep.subr.bf16.mxu0 0
        %788 = vmatpush1.bf16.msra.mxu0 0
        %789 = vmatprep.subr.bf16.mxu0 0
        %790 = vmatpush1.bf16.msra.mxu0 0
        %791 = vmatprep.subr.bf16.mxu0 0
        %792 = vmatpush1.bf16.msra.mxu0 0
        %793 = vmatprep.subr.bf16.mxu0 0
        %794 = vmatpush1.bf16.msra.mxu0 0
        %795 = vmatprep.subr.bf16.mxu0 0
        %796 = vmatpush1.bf16.msra.mxu0 0
        %797 = vmatprep.mubr.bf16.mxu0 0
        %798 = vmatmul.mubr.bf16.gmra.mrb[0].mxu0 %v754
        %v799 = vpop.f32.mrb[0].mxu0
        %v800 = vadd.f32 0.0, %v799
        %v801 = vpop.f32.mrb[0].mxu0
        %v802 = vpop.f32.mrb[0].mxu0
        %v803 = vadd.f32 0.0, %v802
        %v804 = vpop.f32.mrb[0].mxu0
        %805 = vmatprep.mubr.bf16.mxu0 0
        %806 = vmatmul.mubr.bf16.gmra.mrb[0].mxu0 %v757
        %v807 = vpop.f32.mrb[0].mxu0
        %v808 = vadd.f32 0.0, %v807
        %v809 = vpop.f32.mrb[0].mxu0
        %v810 = vpop.f32.mrb[0].mxu0
        %v811 = vadd.f32 0.0, %v810
        %v812 = vpop.f32.mrb[0].mxu0
        %813 = vmatprep.mubr.bf16.mxu0 0
        %814 = vmatmul.mubr.bf16.gmra.mrb[0].mxu0 %v760
        %v815 = vpop.f32.mrb[0].mxu0
        %v816 = vadd.f32 0.0, %v815
        %v817 = vpop.f32.mrb[0].mxu0
        %v818 = vpop.f32.mrb[0].mxu0
        %v819 = vadd.f32 0.0, %v818
        %v820 = vpop.f32.mrb[0].mxu0
        %821 = vmatprep.mubr.bf16.mxu0 0
        %822 = vmatmul.mubr.bf16.gmra.mrb[0].mxu0 %v763
        %v823 = vpop.f32.mrb[0].mxu0
        %v824 = vadd.f32 0.0, %v823
        %v825 = vpop.f32.mrb[0].mxu0
        %v826 = vpop.f32.mrb[0].mxu0
        %v827 = vadd.f32 0.0, %v826
        %v828 = vpop.f32.mrb[0].mxu0
        %829 = vdwg.mxu0
        %v830 = vadd.f32 %v732, %v800
        %v831 = vadd.f32 %v733, %v803
        %v832 = vadd.f32 %v734, %v808
        %v833 = vadd.f32 %v735, %v811
        %v834 = vadd.f32 %v736, %v816
        %v835 = vadd.f32 %v737, %v819
        %v836 = vadd.f32 %v738, %v824
        %v837 = vadd.f32 %v739, %v827
        %838 = vst.msk [vmem:[#allocation2] sm:$0xff] %vm453, %v830
        %839 = vst.msk [vmem:[#allocation2 + $0x8] sm:$0xff] %vm453, %v831
        %840 = vst.msk [vmem:[#allocation2 + $0x10] sm:$0xff] %vm453, %v832
        %841 = vst.msk [vmem:[#allocation2 + $0x18] sm:$0xff] %vm453, %v833
        %842 = vst.msk [vmem:[#allocation2 + $0x20] sm:$0xff] %vm453, %v834
        %843 = vst.msk [vmem:[#allocation2 + $0x28] sm:$0xff] %vm453, %v835
        %844 = vst.msk [vmem:[#allocation2 + $0x30] sm:$0xff] %vm453, %v836
        %845 = vst.msk [vmem:[#allocation2 + $0x38] sm:$0xff] %vm453, %v837
      $region48: #{deepseek_moe_forward.1} parent=39 // pred_fallthru
        _
      // Predicated region
      $region49: #{deepseek_moe_forward.1} parent=39 // pred_check
        %p846 = pneg %p391
      $region50: #{deepseek_moe_forward.1} parent=39 // pred_check_branch
        %848 = sbr.rel (%p846) target = $region52
      $region51: #{deepseek_moe_forward.1} parent=39 // pred_region
        %v849 = vld [vmem:[#allocation2] sm:$0xff]
        %v850 = vld [vmem:[#allocation2 + $0x8] sm:$0xff]
        %v851 = vld [vmem:[#allocation2 + $0x10] sm:$0xff]
        %v852 = vld [vmem:[#allocation2 + $0x18] sm:$0xff]
        %v853 = vld [vmem:[#allocation2 + $0x20] sm:$0xff]
        %v854 = vld [vmem:[#allocation2 + $0x28] sm:$0xff]
        %v855 = vld [vmem:[#allocation2 + $0x30] sm:$0xff]
        %v856 = vld [vmem:[#allocation2 + $0x38] sm:$0xff]
        %vm857 = vcmask 261120
        %858 = vst.msk [vmem:[%s388] sm:$0xff] %vm857, %v849
        %859 = vst.msk [vmem:[%s388 + $0x8] sm:$0xff] %vm857, %v850
        %860 = vst.msk [vmem:[%s388 + $0x10] sm:$0xff] %vm857, %v851
        %861 = vst.msk [vmem:[%s388 + $0x18] sm:$0xff] %vm857, %v852
        %862 = vst.msk [vmem:[%s388 + $0x20] sm:$0xff] %vm857, %v853
        %863 = vst.msk [vmem:[%s388 + $0x28] sm:$0xff] %vm857, %v854
        %864 = vst.msk [vmem:[%s388 + $0x30] sm:$0xff] %vm857, %v855
        %865 = vst.msk [vmem:[%s388 + $0x38] sm:$0xff] %vm857, %v856
      $region52: #{deepseek_moe_forward.1} parent=39 // pred_fallthru
        _
      %s866 = smul.u32 8, %s29
      %p867 = scmp.lt.s32.totalorder %s866, 55
      %s868 = scalar_select %p867, %s866, 55
      %s869 = smul.addr %s868, 8
      %s870 = scalar_lea.vmem %s7, %s869
      // Predicated region
      $region53: #{deepseek_moe_forward.1} parent=39 // pred_check
        %p871 = pneg %p197
      $region54: #{deepseek_moe_forward.1} parent=39 // pred_check_branch
        %873 = sbr.rel (%p871) target = $region56
      $region55: #{deepseek_moe_forward.1} parent=39 // pred_region
        %s874 = smul.u32 8, %s29
      $region56: #{deepseek_moe_forward.1} parent=39 // pred_fallthru
        _
    $region40: #{deepseek_moe_forward.1} parent=5 // pred_fallthru
      _
    %p875 = scmp.le.s32.totalorder 2, %s20
    // Predicated region
    $region57: #{deepseek_moe_forward.1} parent=5 // pred_check
      %p876 = pneg %p875
    $region58: #{deepseek_moe_forward.1} parent=5 // pred_check_branch
      %878 = sbr.rel (%p876) target = $region60
    $region59: #{deepseek_moe_forward.1} parent=5 // pred_region
      %s879 = ssub.s32 %s20, 2
      // Predicated region
      $region61: #{deepseek_moe_forward.1} parent=59 // pred_check
        %p880 = pneg %p203
      $region62: #{deepseek_moe_forward.1} parent=59 // pred_check_branch
        %882 = sbr.rel (%p880) target = $region64
      $region63: #{deepseek_moe_forward.1} parent=59 // pred_region
        %s883 = smul.u32 8, %s31
        %p884 = scmp.lt.s32.totalorder %s883, 55
        %s885 = scalar_select %p884, %s883, 55
        %s886 = smul.addr %s885, 8
        %s887 = scalar_lea.vmem %s7, %s886
      $region64: #{deepseek_moe_forward.1} parent=59 // pred_fallthru
        _
    $region60: #{deepseek_moe_forward.1} parent=5 // pred_fallthru
      _
  $region6: #{deepseek_moe_forward.1} parent=0 // loop_footer
    %s24 = sadd.s32 1, %s20
  $region7: #{deepseek_moe_forward.1} parent=0 // loop_footer_branch
    %19 = sbr.rel target = $region3
  $region8: #{deepseek_moe_forward.1} parent=0 // loop_exit
    _

</llo_original>
